<compile_context>
chip_gen: v5e
topology: v5e:2x2
jax: 0.10.0
libtpu: 0.0.40
codegen_flags: <defaults>
</compile_context>

<pallas_src>
import functools

import jax
import jax.numpy as jnp
from jax.experimental import pallas as pl
from jax.experimental.pallas import tpu as pltpu


def _round_up(x, m):
    return ((x + m - 1) // m) * m


# ------------------------------ Pallas kernel ------------------------------

def _pepper_fused_kernel(flag_ref, x_ref, y_ref, e_ref, w_ref, b_ref, o_ref,
                         *, hidden, latent):
    """Both PepperInvCore directions + the NaN gate, fully fused.

    Weight slab layout (per direction, width DIR = hidden + 2*latent + hidden + 128):
        [W1 | W2(mu|logvar fused) | W3 | W4(out cols padded to 128)]
    Direction 'f' starts at column 0, direction 'b' at column DIR.

    Per direction:
        h       = relu(a @ W1 + b1)           (MXU + VPU)
        [mu|lv] =      h @ W2 + b2            (MXU, fused mu/logvar)
        z       = mu + exp(0.5*lv) * e        (VPU + EUP, f32)
        g       = relu(z @ W3 + b3)           (MXU + VPU)
        out     =      g @ W4 + b4            (MXU, 128 lane-dense columns)

    Output slab: o_ref[:, 0:128)=z_f, [128:256)=y_f, [256:384)=x_b (all full-lane stores).
    """
    bf16 = jnp.bfloat16
    f32 = jnp.float32
    H, L = hidden, latent
    DIR = H + 2 * L + H + 128          # 640 per-direction slab width
    e = e_ref[...]

    def core(a_bf16, off):
        c0, c1 = off, off + H
        h = jnp.dot(a_bf16, w_ref[:, c0:c1], preferred_element_type=f32) + b_ref[:, c0:c1]
        h = jnp.maximum(h, 0.0)

        c0, c1 = off + H, off + H + 2 * L
        mulv = (jnp.dot(h.astype(bf16), w_ref[:, c0:c1], preferred_element_type=f32)
                + b_ref[:, c0:c1])
        mu = mulv[:, :L]                # lane-aligned split (L == 128)
        lv = mulv[:, L:]
        z = mu + jnp.exp(0.5 * lv) * e  # f32 epilogue (no bf16 VPU/EUP on v5e)

        c0, c1 = off + H + 2 * L, off + 2 * H + 2 * L
        g = jnp.dot(z.astype(bf16), w_ref[:, c0:c1], preferred_element_type=f32) + b_ref[:, c0:c1]
        g = jnp.maximum(g, 0.0)

        c0, c1 = off + 2 * H + 2 * L, off + DIR
        out = (jnp.dot(g.astype(bf16), w_ref[:, c0:c1], preferred_element_type=f32)
               + b_ref[:, c0:c1])
        return z, out

    # ----- direction 'f': (x, e) -> (y_f, z_f) -----
    z_f, y_f = core(x_ref[...].astype(bf16), 0)

    # ----- NaN gate (whole-tensor predicate, prefetched as an int32 flag) -----
    # y = y_ if True in torch.isnan(y) else y.squeeze(dim=2)
    y_used = jnp.where(flag_ref[0] != 0, y_f, y_ref[...])

    # ----- direction 'b': (y_used, e) -> (x_b, _) -----
    _, x_b = core(y_used.astype(bf16), DIR)

    # Lane-dense output slab: three full 128-lane stores.
    o_ref[:, 0:L] = z_f
    o_ref[:, L:L + 128] = y_f
    o_ref[:, L + 128:L + 256] = x_b


def _pepper_fused_call(nan_flag, x_p, y_p, e_p, params, *, hidden, latent):
    """x_p / y_p / e_p: (BP, 128) f32 with BP a multiple of the row tile.
    Returns the (BP, 384) f32 output slab [z_f | y_f_pad | x_b_pad]."""
    BP = x_p.shape[0]
    out_w = latent + 256

    tm = BP if BP <= 256 else 256
    assert BP % tm == 0
    grid = (BP // tm,)

    w_slab, b_slab = params["w"], params["b"]

    def rows(n):                                  # batch-tiled activations / output slab
        return pl.BlockSpec((tm, n), lambda i, flag: (i, 0))

    def whole(arr):                               # resident weight / bias slabs
        return pl.BlockSpec(arr.shape, lambda i, flag: (0, 0))

    kernel = functools.partial(_pepper_fused_kernel, hidden=hidden, latent=latent)
    return pl.pallas_call(
        kernel,
        out_shape=jax.ShapeDtypeStruct((BP, out_w), jnp.float32),
        grid_spec=pltpu.PrefetchScalarGridSpec(
            num_scalar_prefetch=1,
            grid=grid,
            in_specs=[rows(x_p.shape[1]), rows(y_p.shape[1]), rows(e_p.shape[1]),
                      whole(w_slab), whole(b_slab)],
            out_specs=rows(out_w),
        ),
        compiler_params=pltpu.CompilerParams(dimension_semantics=("parallel",)),
    )(nan_flag, x_p, y_p, e_p, w_slab, b_slab)


# ------------------------------ model definition ------------------------------

def init_params(key, in_, out_, hidden=128, latent=128):
    """Deterministic synthetic weights for the reconstructed PepperInvCore.

    All eight weight matrices are zero-padded to full 128-wide MXU tiles and packed into one
    bf16 slab of shape (128, 2*DIR); biases into one f32 row (1, 2*DIR).  Nothing is padded
    or sliced per call."""
    assert hidden == 128 and latent == 128, "weight-slab layout assumes 128-wide layers"
    assert in_ <= 128 and out_ <= 128, "I/O widths must fit one 128-lane tile"
    K = 128  # padded contraction / output width
    kf, kb = jax.random.split(key)

    def direction(k, din, dout):
        ks = jax.random.split(k, 4)

        def w(kk, rows_live, cols_live, rows_pad, cols_pad):
            m = (jax.random.normal(kk, (rows_live, cols_live), jnp.float32)
                 / jnp.sqrt(float(rows_live)))
            m = jnp.pad(m, ((0, rows_pad - rows_live), (0, cols_pad - cols_live)))
            return m.astype(jnp.bfloat16)

        w1 = w(ks[0], din, hidden, K, hidden)                 # (128, 128)  rows >= din live
        w2 = w(ks[1], hidden, 2 * latent, hidden, 2 * latent)  # (128, 256)  [mu | logvar]
        w3 = w(ks[2], latent, hidden, latent, hidden)          # (128, 128)
        w4 = w(ks[3], hidden, dout, hidden, K)                 # (128, 128)  cols >= dout live
        wslab = jnp.concatenate([w1, w2, w3, w4], axis=1)      # (128, 640)
        bslab = jnp.zeros((1, hidden + 2 * latent + hidden + K), jnp.float32)
        return wslab, bslab

    wf, bf = direction(kf, in_, out_)
    wb, bb = direction(kb, out_, in_)
    return {"w": jnp.concatenate([wf, wb], axis=1),   # (128, 1280) bf16
            "b": jnp.concatenate([bf, bb], axis=1),   # (1, 1280)   f32
            "hidden": hidden, "latent": latent}


def forward(params, x, y, e):
    """Mirrors PepperNetInv.forward.  x: (B, in_), y: (B, out_, 1), e: (B, latent).
    Returns (x_, y_, z_)."""
    H, L = params["hidden"], params["latent"]
    B, in_ = x.shape
    out_ = y.shape[1]
    assert e.shape[1] == L

    # Whole-tensor NaN gate on the ORIGINAL y (matches `True in torch.isnan(y)`),
    # passed to the kernel as a scalar-prefetch flag.
    nan_flag = jnp.any(jnp.isnan(y)).astype(jnp.int32).reshape(1)
    y_sq = jnp.squeeze(y, axis=2)

    # One-time padding: rows to the batch tile, columns to 128 lanes.
    BP8 = _round_up(B, 8)
    BP = BP8 if BP8 <= 256 else _round_up(BP8, 256)

    def pad_to(t, cols):
        return jnp.pad(t, ((0, BP - t.shape[0]), (0, cols - t.shape[1])))

    x_p = pad_to(x, 128)
    y_p = pad_to(y_sq, 128)
    e_p = pad_to(e, L)

    out_slab = _pepper_fused_call(nan_flag, x_p, y_p, e_p, params, hidden=H, latent=L)

    z_f = out_slab[:B, 0:L]
    y_f = out_slab[:B, L:L + out_]
    x_b = out_slab[:B, L + 128:L + 128 + in_]
    return x_b, y_f, z_f


# ----------------------------------- main -----------------------------------

if __name__ == "__main__":
    key = jax.random.PRNGKey(0)
    kx, ky, ke, kp = jax.random.split(key, 4)

    B, IN_, OUT_, HIDDEN, LATENT = 2, 64, 32, 128, 128

    params = init_params(kp, IN_, OUT_, hidden=HIDDEN, latent=LATENT)
    x = jax.random.normal(kx, (B, IN_), jnp.float32)
    y = jax.random.normal(ky, (B, OUT_, 1), jnp.float32)   # squeezed at dim=2 in forward
    e = jax.random.normal(ke, (B, LATENT), jnp.float32)

    fwd = jax.jit(functools.partial(forward, params))

    x_, y_, z_ = fwd(x, y, e)
    jax.block_until_ready((x_, y_, z_))
    assert x_.shape == (B, IN_) and y_.shape == (B, OUT_) and z_.shape == (B, LATENT)
    assert not bool(jnp.any(jnp.isnan(x_)))
    assert not bool(jnp.any(jnp.isnan(y_)))
    assert not bool(jnp.any(jnp.isnan(z_)))

    # Exercise the NaN gate: if y contains NaN, the core's own y_ prediction is used instead.
    y_nan = y.at[0, 0, 0].set(jnp.nan)
    x2_, y2_, z2_ = fwd(x, y_nan, e)
    jax.block_until_ready((x2_, y2_, z2_))
    assert not bool(jnp.any(jnp.isnan(x2_)))
    assert not bool(jnp.any(jnp.isnan(y2_)))

    print("KERNEL_OK")
</pallas_src>

<mosaic_0001>
module attributes {stable_mosaic.version = 11 : i64} {
  func.func @_pepper_fused_kernel(%arg0: i32, %arg1: memref<1xi32, #tpu.memory_space<smem>>, %arg2: memref<8x128xf32, #tpu.memory_space<vmem>>, %arg3: memref<8x128xf32, #tpu.memory_space<vmem>>, %arg4: memref<8x128xf32, #tpu.memory_space<vmem>>, %arg5: memref<128x1280xbf16, #tpu.memory_space<vmem>>, %arg6: memref<1x1280xf32, #tpu.memory_space<vmem>>, %arg7: memref<8x384xf32, #tpu.memory_space<vmem>>) attributes {dimension_semantics = [#tpu.dimension_semantics<parallel>], iteration_bounds = array<i64: 1>, scalar_prefetch = 1 : i64, scratch_operands = 0 : i64, tpu.core_type = #tpu.core_type<tc>, window_params = [{transform_indices = @transform_0, window_bounds = array<i64: 8, 128>}, {transform_indices = @transform_1, window_bounds = array<i64: 8, 128>}, {transform_indices = @transform_2, window_bounds = array<i64: 8, 128>}, {pipeline_mode = #tpu.pipeline_mode<synchronous>, transform_indices = @transform_3, window_bounds = array<i64: 128, 1280>}, {pipeline_mode = #tpu.pipeline_mode<synchronous>, transform_indices = @transform_4, window_bounds = array<i64: 1, 1280>}, {transform_indices = @transform_5, window_bounds = array<i64: 8, 384>}]} {
    %c0 = arith.constant 0 : index
    %c0_0 = arith.constant 0 : index
    %0 = vector.load %arg4[%c0, %c0_0] : memref<8x128xf32, #tpu.memory_space<vmem>>, vector<8x128xf32>
    %c0_1 = arith.constant 0 : index
    %c0_2 = arith.constant 0 : index
    %1 = vector.load %arg2[%c0_1, %c0_2] : memref<8x128xf32, #tpu.memory_space<vmem>>, vector<8x128xf32>
    %2 = arith.truncf %1 : vector<8x128xf32> to vector<8x128xbf16>
    %c0_3 = arith.constant 0 : index
    %c0_4 = arith.constant 0 : index
    %3 = vector.load %arg5[%c0_3, %c0_4] : memref<128x1280xbf16, #tpu.memory_space<vmem>>, vector<128x128xbf16>
    %cst = arith.constant dense<0.000000e+00> : vector<8x128xf32>
    %4 = tpu.matmul %2, %3, %cst {dimension_numbers = #tpu.dot_dimension_numbers<[1], [0], [0], [1], [0, 0, 1, 1], [], []>} : vector<8x128xbf16>, vector<128x128xbf16>, vector<8x128xf32> -> vector<8x128xf32>
    %c0_5 = arith.constant 0 : index
    %c0_6 = arith.constant 0 : index
    %5 = vector.load %arg6[%c0_5, %c0_6] : memref<1x1280xf32, #tpu.memory_space<vmem>>, vector<1x128xf32>
    %6 = vector.broadcast %5 : vector<1x128xf32> to vector<8x128xf32>
    %7 = arith.addf %4, %6 : vector<8x128xf32>
    %cst_7 = arith.constant 0.000000e+00 : f32
    %8 = vector.broadcast %cst_7 : f32 to vector<8x128xf32>
    %9 = arith.maximumf %7, %8 : vector<8x128xf32>
    %10 = arith.truncf %9 : vector<8x128xf32> to vector<8x128xbf16>
    %c0_8 = arith.constant 0 : index
    %c128 = arith.constant 128 : index
    %11 = vector.load %arg5[%c0_8, %c128] : memref<128x1280xbf16, #tpu.memory_space<vmem>>, vector<128x256xbf16>
    %cst_9 = arith.constant dense<0.000000e+00> : vector<8x256xf32>
    %12 = tpu.matmul %10, %11, %cst_9 {dimension_numbers = #tpu.dot_dimension_numbers<[1], [0], [0], [1], [0, 0, 1, 1], [], []>} : vector<8x128xbf16>, vector<128x256xbf16>, vector<8x256xf32> -> vector<8x256xf32>
    %c0_10 = arith.constant 0 : index
    %c128_11 = arith.constant 128 : index
    %13 = vector.load %arg6[%c0_10, %c128_11] : memref<1x1280xf32, #tpu.memory_space<vmem>>, vector<1x256xf32>
    %14 = vector.broadcast %13 : vector<1x256xf32> to vector<8x256xf32>
    %15 = arith.addf %12, %14 : vector<8x256xf32>
    %16 = vector.extract_strided_slice %15 {offsets = [0, 0], sizes = [8, 128], strides = [1, 1]} : vector<8x256xf32> to vector<8x128xf32>
    %17 = vector.extract_strided_slice %15 {offsets = [0, 128], sizes = [8, 128], strides = [1, 1]} : vector<8x256xf32> to vector<8x128xf32>
    %cst_12 = arith.constant 5.000000e-01 : f32
    %18 = vector.broadcast %cst_12 : f32 to vector<8x128xf32>
    %19 = arith.mulf %18, %17 : vector<8x128xf32>
    %20 = math.exp %19 : vector<8x128xf32>
    %21 = arith.mulf %20, %0 : vector<8x128xf32>
    %22 = arith.addf %16, %21 : vector<8x128xf32>
    %23 = arith.truncf %22 : vector<8x128xf32> to vector<8x128xbf16>
    %c0_13 = arith.constant 0 : index
    %c384 = arith.constant 384 : index
    %24 = vector.load %arg5[%c0_13, %c384] : memref<128x1280xbf16, #tpu.memory_space<vmem>>, vector<128x128xbf16>
    %cst_14 = arith.constant dense<0.000000e+00> : vector<8x128xf32>
    %25 = tpu.matmul %23, %24, %cst_14 {dimension_numbers = #tpu.dot_dimension_numbers<[1], [0], [0], [1], [0, 0, 1, 1], [], []>} : vector<8x128xbf16>, vector<128x128xbf16>, vector<8x128xf32> -> vector<8x128xf32>
    %c0_15 = arith.constant 0 : index
    %c384_16 = arith.constant 384 : index
    %26 = vector.load %arg6[%c0_15, %c384_16] : memref<1x1280xf32, #tpu.memory_space<vmem>>, vector<1x128xf32>
    %27 = vector.broadcast %26 : vector<1x128xf32> to vector<8x128xf32>
    %28 = arith.addf %25, %27 : vector<8x128xf32>
    %cst_17 = arith.constant 0.000000e+00 : f32
    %29 = vector.broadcast %cst_17 : f32 to vector<8x128xf32>
    %30 = arith.maximumf %28, %29 : vector<8x128xf32>
    %31 = arith.truncf %30 : vector<8x128xf32> to vector<8x128xbf16>
    %c0_18 = arith.constant 0 : index
    %c512 = arith.constant 512 : index
    %32 = vector.load %arg5[%c0_18, %c512] : memref<128x1280xbf16, #tpu.memory_space<vmem>>, vector<128x128xbf16>
    %cst_19 = arith.constant dense<0.000000e+00> : vector<8x128xf32>
    %33 = tpu.matmul %31, %32, %cst_19 {dimension_numbers = #tpu.dot_dimension_numbers<[1], [0], [0], [1], [0, 0, 1, 1], [], []>} : vector<8x128xbf16>, vector<128x128xbf16>, vector<8x128xf32> -> vector<8x128xf32>
    %c0_20 = arith.constant 0 : index
    %c512_21 = arith.constant 512 : index
    %34 = vector.load %arg6[%c0_20, %c512_21] : memref<1x1280xf32, #tpu.memory_space<vmem>>, vector<1x128xf32>
    %35 = vector.broadcast %34 : vector<1x128xf32> to vector<8x128xf32>
    %36 = arith.addf %33, %35 : vector<8x128xf32>
    %c0_22 = arith.constant 0 : index
    %37 = memref.load %arg1[%c0_22] : memref<1xi32, #tpu.memory_space<smem>>
    %c0_i32 = arith.constant 0 : i32
    %38 = arith.cmpi ne, %37, %c0_i32 : i32
    %c0_23 = arith.constant 0 : index
    %c0_24 = arith.constant 0 : index
    %39 = vector.load %arg3[%c0_23, %c0_24] : memref<8x128xf32, #tpu.memory_space<vmem>>, vector<8x128xf32>
    %40 = arith.select %38, %36, %39 : vector<8x128xf32>
    %41 = arith.truncf %40 : vector<8x128xf32> to vector<8x128xbf16>
    %c0_25 = arith.constant 0 : index
    %c640 = arith.constant 640 : index
    %42 = vector.load %arg5[%c0_25, %c640] : memref<128x1280xbf16, #tpu.memory_space<vmem>>, vector<128x128xbf16>
    %cst_26 = arith.constant dense<0.000000e+00> : vector<8x128xf32>
    %43 = tpu.matmul %41, %42, %cst_26 {dimension_numbers = #tpu.dot_dimension_numbers<[1], [0], [0], [1], [0, 0, 1, 1], [], []>} : vector<8x128xbf16>, vector<128x128xbf16>, vector<8x128xf32> -> vector<8x128xf32>
    %c0_27 = arith.constant 0 : index
    %c640_28 = arith.constant 640 : index
    %44 = vector.load %arg6[%c0_27, %c640_28] : memref<1x1280xf32, #tpu.memory_space<vmem>>, vector<1x128xf32>
    %45 = vector.broadcast %44 : vector<1x128xf32> to vector<8x128xf32>
    %46 = arith.addf %43, %45 : vector<8x128xf32>
    %cst_29 = arith.constant 0.000000e+00 : f32
    %47 = vector.broadcast %cst_29 : f32 to vector<8x128xf32>
    %48 = arith.maximumf %46, %47 : vector<8x128xf32>
    %49 = arith.truncf %48 : vector<8x128xf32> to vector<8x128xbf16>
    %c0_30 = arith.constant 0 : index
    %c768 = arith.constant 768 : index
    %50 = vector.load %arg5[%c0_30, %c768] : memref<128x1280xbf16, #tpu.memory_space<vmem>>, vector<128x256xbf16>
    %cst_31 = arith.constant dense<0.000000e+00> : vector<8x256xf32>
    %51 = tpu.matmul %49, %50, %cst_31 {dimension_numbers = #tpu.dot_dimension_numbers<[1], [0], [0], [1], [0, 0, 1, 1], [], []>} : vector<8x128xbf16>, vector<128x256xbf16>, vector<8x256xf32> -> vector<8x256xf32>
    %c0_32 = arith.constant 0 : index
    %c768_33 = arith.constant 768 : index
    %52 = vector.load %arg6[%c0_32, %c768_33] : memref<1x1280xf32, #tpu.memory_space<vmem>>, vector<1x256xf32>
    %53 = vector.broadcast %52 : vector<1x256xf32> to vector<8x256xf32>
    %54 = arith.addf %51, %53 : vector<8x256xf32>
    %55 = vector.extract_strided_slice %54 {offsets = [0, 0], sizes = [8, 128], strides = [1, 1]} : vector<8x256xf32> to vector<8x128xf32>
    %56 = vector.extract_strided_slice %54 {offsets = [0, 128], sizes = [8, 128], strides = [1, 1]} : vector<8x256xf32> to vector<8x128xf32>
    %cst_34 = arith.constant 5.000000e-01 : f32
    %57 = vector.broadcast %cst_34 : f32 to vector<8x128xf32>
    %58 = arith.mulf %57, %56 : vector<8x128xf32>
    %59 = math.exp %58 : vector<8x128xf32>
    %60 = arith.mulf %59, %0 : vector<8x128xf32>
    %61 = arith.addf %55, %60 : vector<8x128xf32>
    %62 = arith.truncf %61 : vector<8x128xf32> to vector<8x128xbf16>
    %c0_35 = arith.constant 0 : index
    %c1024 = arith.constant 1024 : index
    %63 = vector.load %arg5[%c0_35, %c1024] : memref<128x1280xbf16, #tpu.memory_space<vmem>>, vector<128x128xbf16>
    %cst_36 = arith.constant dense<0.000000e+00> : vector<8x128xf32>
    %64 = tpu.matmul %62, %63, %cst_36 {dimension_numbers = #tpu.dot_dimension_numbers<[1], [0], [0], [1], [0, 0, 1, 1], [], []>} : vector<8x128xbf16>, vector<128x128xbf16>, vector<8x128xf32> -> vector<8x128xf32>
    %c0_37 = arith.constant 0 : index
    %c1024_38 = arith.constant 1024 : index
    %65 = vector.load %arg6[%c0_37, %c1024_38] : memref<1x1280xf32, #tpu.memory_space<vmem>>, vector<1x128xf32>
    %66 = vector.broadcast %65 : vector<1x128xf32> to vector<8x128xf32>
    %67 = arith.addf %64, %66 : vector<8x128xf32>
    %cst_39 = arith.constant 0.000000e+00 : f32
    %68 = vector.broadcast %cst_39 : f32 to vector<8x128xf32>
    %69 = arith.maximumf %67, %68 : vector<8x128xf32>
    %70 = arith.truncf %69 : vector<8x128xf32> to vector<8x128xbf16>
    %c0_40 = arith.constant 0 : index
    %c1152 = arith.constant 1152 : index
    %71 = vector.load %arg5[%c0_40, %c1152] : memref<128x1280xbf16, #tpu.memory_space<vmem>>, vector<128x128xbf16>
    %cst_41 = arith.constant dense<0.000000e+00> : vector<8x128xf32>
    %72 = tpu.matmul %70, %71, %cst_41 {dimension_numbers = #tpu.dot_dimension_numbers<[1], [0], [0], [1], [0, 0, 1, 1], [], []>} : vector<8x128xbf16>, vector<128x128xbf16>, vector<8x128xf32> -> vector<8x128xf32>
    %c0_42 = arith.constant 0 : index
    %c1152_43 = arith.constant 1152 : index
    %73 = vector.load %arg6[%c0_42, %c1152_43] : memref<1x1280xf32, #tpu.memory_space<vmem>>, vector<1x128xf32>
    %74 = vector.broadcast %73 : vector<1x128xf32> to vector<8x128xf32>
    %75 = arith.addf %72, %74 : vector<8x128xf32>
    %c0_44 = arith.constant 0 : index
    %c0_45 = arith.constant 0 : index
    %76 = vector.load %arg7[%c0_44, %c0_45] : memref<8x384xf32, #tpu.memory_space<vmem>>, vector<8x128xf32>
    tpu.vector_store %arg7[%c0_44, %c0_45], %22 {strides = array<i32>} : memref<8x384xf32, #tpu.memory_space<vmem>>, vector<8x128xf32>,
    %c0_46 = arith.constant 0 : index
    %c128_47 = arith.constant 128 : index
    %77 = vector.load %arg7[%c0_46, %c128_47] : memref<8x384xf32, #tpu.memory_space<vmem>>, vector<8x128xf32>
    tpu.vector_store %arg7[%c0_46, %c128_47], %36 {strides = array<i32>} : memref<8x384xf32, #tpu.memory_space<vmem>>, vector<8x128xf32>,
    %c0_48 = arith.constant 0 : index
    %c256 = arith.constant 256 : index
    %78 = vector.load %arg7[%c0_48, %c256] : memref<8x384xf32, #tpu.memory_space<vmem>>, vector<8x128xf32>
    tpu.vector_store %arg7[%c0_48, %c256], %75 {strides = array<i32>} : memref<8x384xf32, #tpu.memory_space<vmem>>, vector<8x128xf32>,
    return
  }
  func.func @transform_0(%arg0: i32, %arg1: memref<1xi32, #tpu.memory_space<smem>>) -> (i32, i32) {
    %c0_i32 = arith.constant 0 : i32
    %c0_i32_0 = arith.constant 0 : i32
    return %arg0, %c0_i32 : i32, i32
  }
  func.func @transform_1(%arg0: i32, %arg1: memref<1xi32, #tpu.memory_space<smem>>) -> (i32, i32) {
    %c0_i32 = arith.constant 0 : i32
    %c0_i32_0 = arith.constant 0 : i32
    return %arg0, %c0_i32 : i32, i32
  }
  func.func @transform_2(%arg0: i32, %arg1: memref<1xi32, #tpu.memory_space<smem>>) -> (i32, i32) {
    %c0_i32 = arith.constant 0 : i32
    %c0_i32_0 = arith.constant 0 : i32
    return %arg0, %c0_i32 : i32, i32
  }
  func.func @transform_3(%arg0: i32, %arg1: memref<1xi32, #tpu.memory_space<smem>>) -> (i32, i32) {
    %c0_i32 = arith.constant 0 : i32
    %c0_i32_0 = arith.constant 0 : i32
    %c0_i32_1 = arith.constant 0 : i32
    return %c0_i32, %c0_i32_0 : i32, i32
  }
  func.func @transform_4(%arg0: i32, %arg1: memref<1xi32, #tpu.memory_space<smem>>) -> (i32, i32) {
    %c0_i32 = arith.constant 0 : i32
    %c0_i32_0 = arith.constant 0 : i32
    %c0_i32_1 = arith.constant 0 : i32
    return %c0_i32, %c0_i32_0 : i32, i32
  }
  func.func @transform_5(%arg0: i32, %arg1: memref<1xi32, #tpu.memory_space<smem>>) -> (i32, i32) {
    %c0_i32 = arith.constant 0 : i32
    %c0_i32_0 = arith.constant 0 : i32
    return %arg0, %c0_i32 : i32, i32
  }
}

</mosaic_0001>

<llo_original>
// kernel: forward.1
$region0: #{forward.1}
  #allocation0 [shape = 'u32[]', space=smem, size = 0x4, offset = 0x4, fixed_abs, tag = 'smem constant byte address 0x4 - core index']
  #allocation1 [shape = 'u32[72,128]{1,0:T(1,128)}', space=vmem, size = 0x9000, scoped, tag = 'internal scratch']
  #allocation2 [shape = 's32[1]{0}', space=sflag, size = 0x4, scoped, tag = 'scoped memory for forward.1']
  #allocation3 [shape = 's32[1]{0:T(128)S(6)}', space=smem, size = 0x200, scoped, tag = 'prefetched SMEM operand 0']
  %s0 = inlined_call_operand.<no memory space> [shape: s32[1], index: 0, kind: input, shape index: {}]
  %s1 = inlined_call_operand.vmem [shape: f32[8,128], index: 1, kind: input, shape index: {}]
  %s2 = inlined_call_operand.vmem [shape: f32[8,128], index: 2, kind: input, shape index: {}]
  %s3 = inlined_call_operand.vmem [shape: f32[8,128], index: 3, kind: input, shape index: {}]
  %s4 = inlined_call_operand.hbm [shape: bf16[128,1280], index: 4, kind: input, shape index: {}]
  %s5 = inlined_call_operand.vmem [shape: f32[1,1280], index: 5, kind: input, shape index: {}]
  %s6 = inlined_call_operand.vmem [shape: f32[8,384], index: 6, kind: output, shape index: {}]
  %s7 = sld [smem:[#allocation0]]
  $region34: #{forward.1} parent=0
    _
  %s9 = ssub.s32 1, %s7
  %s10 = scalar_select 0, %s9, %s7
  %11 = sst [smem:[#allocation3]] %s0
  $region1: #{forward.1} parent=0
    #allocation4 [shape = 'u8[327680]{0}', space=vmem, size = 0x50000, scoped, tag = 'input window, operand 4, single buffered']
    #allocation5 [shape = 's32[1]{0}', space=sflag, size = 0x4, scoped, tag = 'scoped memory for forward.1']
    %12 = vsyncpa [#allocation5], 0
    // Predicated region
    $region2: #{forward.1} parent=1 // pred_check
      _
    $region3: #{forward.1} parent=1 // pred_check_branch
      %14 = sbr.rel (0) target = $region5
    $region4: #{forward.1} parent=1 // pred_region
      _
    $region5: #{forward.1} parent=1 // pred_fallthru
      _
    // Predicated region
    $region6: #{forward.1} parent=1 // pred_check
      _
    $region7: #{forward.1} parent=1 // pred_check_branch
      %16 = sbr.rel (0) target = $region9
    $region8: #{forward.1} parent=1 // pred_region
      _
    $region9: #{forward.1} parent=1 // pred_fallthru
      _
    // Predicated region
    $region10: #{forward.1} parent=1 // pred_check
      _
    $region11: #{forward.1} parent=1 // pred_check_branch
      %18 = sbr.rel (0) target = $region13
    $region12: #{forward.1} parent=1 // pred_region
      _
    $region13: #{forward.1} parent=1 // pred_fallthru
      _
    // Predicated region
    $region14: #{forward.1} parent=1 // pred_check
      _
    $region15: #{forward.1} parent=1 // pred_check_branch
      %20 = sbr.rel (0) target = $region17
    $region16: #{forward.1} parent=1 // pred_region
      %22 = vsyncadd [#allocation5], 0
      %s23 = sshll.u32 %s4, 4
      %s24 = int_to_ptr.hbm [resolvable:$true] %s23
      %s25 = sshll.u32 [#allocation4], 4
      %s26 = int_to_ptr.vmem [resolvable:$true] %s25
      %31 = dma.hbm_to_vmem [thread:$0]  %s24, 10240, %s26, [#allocation5], 640, 640, 40
    $region17: #{forward.1} parent=1 // pred_fallthru
      _
    // Predicated region
    $region18: #{forward.1} parent=1 // pred_check
      _
    $region19: #{forward.1} parent=1 // pred_check_branch
      %33 = sbr.rel (0) target = $region21
    $region20: #{forward.1} parent=1 // pred_region
      _
    $region21: #{forward.1} parent=1 // pred_fallthru
      _
    // Predicated region
    $region22: #{forward.1} parent=1 // pred_check
      _
    $region23: #{forward.1} parent=1 // pred_check_branch
      %35 = sbr.rel (0) target = $region25
    $region24: #{forward.1} parent=1 // pred_region
      %37 = dma.done [#allocation5], 10240
    $region25: #{forward.1} parent=1 // pred_fallthru
      _
    %v38 = vld [vmem:[%s3] sm:$0xff]
    %v39 = vld [vmem:[%s1] sm:$0xff]
    %v40 = vpack.c.bf16 %v39, %v39
    %v41 = vld [vmem:[#allocation4] sm:$0xf]
    %v42 = vld [vmem:[#allocation4 + $0x28] sm:$0xf]
    %v43 = vld [vmem:[#allocation4 + $0x50] sm:$0xf]
    %v44 = vld [vmem:[#allocation4 + $0x78] sm:$0xf]
    %v45 = vld [vmem:[#allocation4 + $0xa0] sm:$0xf]
    %v46 = vld [vmem:[#allocation4 + $0xc8] sm:$0xf]
    %v47 = vld [vmem:[#allocation4 + $0xf0] sm:$0xf]
    %v48 = vld [vmem:[#allocation4 + $0x118] sm:$0xf]
    %v49 = vld [vmem:[#allocation4 + $0x140] sm:$0xf]
    %v50 = vld [vmem:[#allocation4 + $0x168] sm:$0xf]
    %v51 = vld [vmem:[#allocation4 + $0x190] sm:$0xf]
    %v52 = vld [vmem:[#allocation4 + $0x1b8] sm:$0xf]
    %v53 = vld [vmem:[#allocation4 + $0x1e0] sm:$0xf]
    %v54 = vld [vmem:[#allocation4 + $0x208] sm:$0xf]
    %v55 = vld [vmem:[#allocation4 + $0x230] sm:$0xf]
    %v56 = vld [vmem:[#allocation4 + $0x258] sm:$0xf]
    %v57 = vld [vmem:[%s5] sm:$0x1]
    %v59 = vperm.slane %v57, 0
    %v77 = vunpack.c.l.b16 %v41
    %v78 = vunpack.c.l.b16 %v42
    %v79 = vunpack.c.l.b16 %v43
    %v80 = vunpack.c.l.b16 %v44
    %v81 = vunpack.c.l.b16 %v45
    %v82 = vunpack.c.l.b16 %v46
    %v83 = vunpack.c.l.b16 %v47
    %v84 = vunpack.c.l.b16 %v48
    %v85 = vunpack.c.l.b16 %v49
    %v86 = vunpack.c.l.b16 %v50
    %v87 = vunpack.c.l.b16 %v51
    %v88 = vunpack.c.l.b16 %v52
    %v89 = vunpack.c.l.b16 %v53
    %v90 = vunpack.c.l.b16 %v54
    %v91 = vunpack.c.l.b16 %v55
    %v92 = vunpack.c.l.b16 %v56
    %v93 = vpack.c.b16 %v78, %v77
    %v94 = vpack.c.b16 %v80, %v79
    %v95 = vpack.c.b16 %v82, %v81
    %v96 = vpack.c.b16 %v84, %v83
    %v97 = vpack.c.b16 %v86, %v85
    %v98 = vpack.c.b16 %v88, %v87
    %v99 = vpack.c.b16 %v90, %v89
    %v100 = vpack.c.b16 %v92, %v91
    %109 = vmatpush.bf16.msra.mxu0 %v100
    %110 = vmatpush.bf16.msra.mxu0 %v99
    %111 = vmatpush.bf16.msra.mxu0 %v98
    %112 = vmatpush.bf16.msra.mxu0 %v97
    %113 = vmatpush.bf16.msra.mxu0 %v96
    %114 = vmatpush.bf16.msra.mxu0 %v95
    %115 = vmatpush.bf16.msra.mxu0 %v94
    %116 = vmatpush.bf16.msra.mxu0 %v93
    %117 = vmatmul.bf16.gmra.mxu0 %v40
    %v118 = vpop.f32.mrf.mxu0
    %v119 = vadd.f32 %v59, %v118
    %v120 = vpop.f32.mrf.mxu0
    %121 = vdwg.mxu0
    %v122 = vmax.f32 %v119, 0.0
    %v123 = vpack.c.bf16 %v122, %v122
    %v124 = vld [vmem:[#allocation4 + $0x4] sm:$0xff]
    %v125 = vld [vmem:[#allocation4 + $0x2c] sm:$0xff]
    %v126 = vld [vmem:[#allocation4 + $0x54] sm:$0xff]
    %v127 = vld [vmem:[#allocation4 + $0x7c] sm:$0xff]
    %v128 = vld [vmem:[#allocation4 + $0xa4] sm:$0xff]
    %v129 = vld [vmem:[#allocation4 + $0xcc] sm:$0xff]
    %v130 = vld [vmem:[#allocation4 + $0xf4] sm:$0xff]
    %v131 = vld [vmem:[#allocation4 + $0x11c] sm:$0xff]
    %v132 = vld [vmem:[#allocation4 + $0x144] sm:$0xff]
    %v133 = vld [vmem:[#allocation4 + $0x16c] sm:$0xff]
    %v134 = vld [vmem:[#allocation4 + $0x194] sm:$0xff]
    %v135 = vld [vmem:[#allocation4 + $0x1bc] sm:$0xff]
    %v136 = vld [vmem:[#allocation4 + $0x1e4] sm:$0xff]
    %v137 = vld [vmem:[#allocation4 + $0x20c] sm:$0xff]
    %v138 = vld [vmem:[#allocation4 + $0x234] sm:$0xff]
    %v139 = vld [vmem:[#allocation4 + $0x25c] sm:$0xff]
    %v140 = vld [vmem:[%s5 + $0x1] sm:$0x3]
    %v142 = vperm.slane %v140, 0
    %v143 = vperm.slane %v140, 1
    %v162 = vunpack.c.l.b16 %v124
    %v163 = vunpack.c.h.b16 %v124
    %v164 = vunpack.c.l.b16 %v125
    %v165 = vunpack.c.h.b16 %v125
    %v166 = vunpack.c.l.b16 %v126
    %v167 = vunpack.c.h.b16 %v126
    %v168 = vunpack.c.l.b16 %v127
    %v169 = vunpack.c.h.b16 %v127
    %v170 = vunpack.c.l.b16 %v128
    %v171 = vunpack.c.h.b16 %v128
    %v172 = vunpack.c.l.b16 %v129
    %v173 = vunpack.c.h.b16 %v129
    %v174 = vunpack.c.l.b16 %v130
    %v175 = vunpack.c.h.b16 %v130
    %v176 = vunpack.c.l.b16 %v131
    %v177 = vunpack.c.h.b16 %v131
    %v178 = vunpack.c.l.b16 %v132
    %v179 = vunpack.c.h.b16 %v132
    %v180 = vunpack.c.l.b16 %v133
    %v181 = vunpack.c.h.b16 %v133
    %v182 = vunpack.c.l.b16 %v134
    %v183 = vunpack.c.h.b16 %v134
    %v184 = vunpack.c.l.b16 %v135
    %v185 = vunpack.c.h.b16 %v135
    %v186 = vunpack.c.l.b16 %v136
    %v187 = vunpack.c.h.b16 %v136
    %v188 = vunpack.c.l.b16 %v137
    %v189 = vunpack.c.h.b16 %v137
    %v190 = vunpack.c.l.b16 %v138
    %v191 = vunpack.c.h.b16 %v138
    %v192 = vunpack.c.l.b16 %v139
    %v193 = vunpack.c.h.b16 %v139
    %v194 = vpack.c.b16 %v164, %v162
    %v195 = vpack.c.b16 %v165, %v163
    %v196 = vpack.c.b16 %v168, %v166
    %v197 = vpack.c.b16 %v169, %v167
    %v198 = vpack.c.b16 %v172, %v170
    %v199 = vpack.c.b16 %v173, %v171
    %v200 = vpack.c.b16 %v176, %v174
    %v201 = vpack.c.b16 %v177, %v175
    %v202 = vpack.c.b16 %v180, %v178
    %v203 = vpack.c.b16 %v181, %v179
    %v204 = vpack.c.b16 %v184, %v182
    %v205 = vpack.c.b16 %v185, %v183
    %v206 = vpack.c.b16 %v188, %v186
    %v207 = vpack.c.b16 %v189, %v187
    %v208 = vpack.c.b16 %v192, %v190
    %v209 = vpack.c.b16 %v193, %v191
    %226 = vmatpush.bf16.msra.mxu0 %v208
    %227 = vmatpush.bf16.msra.mxu0 %v206
    %228 = vmatpush.bf16.msra.mxu0 %v204
    %229 = vmatpush.bf16.msra.mxu0 %v202
    %230 = vmatpush.bf16.msra.mxu0 %v200
    %231 = vmatpush.bf16.msra.mxu0 %v198
    %232 = vmatpush.bf16.msra.mxu0 %v196
    %233 = vmatpush.bf16.msra.mxu0 %v194
    %234 = vmatmul.bf16.gmra.mxu0 %v123
    %v235 = vpop.f32.mrf.mxu0
    %v236 = vadd.f32 %v142, %v235
    %v237 = vpop.f32.mrf.mxu0
    %238 = vdwg.mxu0
    %239 = vmatpush.bf16.msra.mxu0 %v209
    %240 = vmatpush.bf16.msra.mxu0 %v207
    %241 = vmatpush.bf16.msra.mxu0 %v205
    %242 = vmatpush.bf16.msra.mxu0 %v203
    %243 = vmatpush.bf16.msra.mxu0 %v201
    %244 = vmatpush.bf16.msra.mxu0 %v199
    %245 = vmatpush.bf16.msra.mxu0 %v197
    %246 = vmatpush.bf16.msra.mxu0 %v195
    %247 = vmatmul.bf16.gmra.mxu0 %v123
    %v248 = vpop.f32.mrf.mxu0
    %v249 = vadd.f32 %v143, %v248
    %v250 = vpop.f32.mrf.mxu0
    %251 = vdwg.mxu0
    %v252 = vmul.f32 %v249, 0.5
    %v253 = vmul.f32 %v252, 1.442695
    %v254 = vpow.pop %v253
    %v255 = vmul.f32 %v254, %v38
    %v256 = vadd.f32 %v236, %v255
    %v257 = vpack.c.bf16 %v256, %v256
    %v258 = vld [vmem:[#allocation4 + $0xc] sm:$0xf]
    %v259 = vld [vmem:[#allocation4 + $0x34] sm:$0xf]
    %v260 = vld [vmem:[#allocation4 + $0x5c] sm:$0xf]
    %v261 = vld [vmem:[#allocation4 + $0x84] sm:$0xf]
    %v262 = vld [vmem:[#allocation4 + $0xac] sm:$0xf]
    %v263 = vld [vmem:[#allocation4 + $0xd4] sm:$0xf]
    %v264 = vld [vmem:[#allocation4 + $0xfc] sm:$0xf]
    %v265 = vld [vmem:[#allocation4 + $0x124] sm:$0xf]
    %v266 = vld [vmem:[#allocation4 + $0x14c] sm:$0xf]
    %v267 = vld [vmem:[#allocation4 + $0x174] sm:$0xf]
    %v268 = vld [vmem:[#allocation4 + $0x19c] sm:$0xf]
    %v269 = vld [vmem:[#allocation4 + $0x1c4] sm:$0xf]
    %v270 = vld [vmem:[#allocation4 + $0x1ec] sm:$0xf]
    %v271 = vld [vmem:[#allocation4 + $0x214] sm:$0xf]
    %v272 = vld [vmem:[#allocation4 + $0x23c] sm:$0xf]
    %v273 = vld [vmem:[#allocation4 + $0x264] sm:$0xf]
    %v274 = vld [vmem:[%s5 + $0x3] sm:$0x1]
    %v276 = vperm.slane %v274, 0
    %v294 = vunpack.c.l.b16 %v258
    %v295 = vunpack.c.l.b16 %v259
    %v296 = vunpack.c.l.b16 %v260
    %v297 = vunpack.c.l.b16 %v261
    %v298 = vunpack.c.l.b16 %v262
    %v299 = vunpack.c.l.b16 %v263
    %v300 = vunpack.c.l.b16 %v264
    %v301 = vunpack.c.l.b16 %v265
    %v302 = vunpack.c.l.b16 %v266
    %v303 = vunpack.c.l.b16 %v267
    %v304 = vunpack.c.l.b16 %v268
    %v305 = vunpack.c.l.b16 %v269
    %v306 = vunpack.c.l.b16 %v270
    %v307 = vunpack.c.l.b16 %v271
    %v308 = vunpack.c.l.b16 %v272
    %v309 = vunpack.c.l.b16 %v273
    %v310 = vpack.c.b16 %v295, %v294
    %v311 = vpack.c.b16 %v297, %v296
    %v312 = vpack.c.b16 %v299, %v298
    %v313 = vpack.c.b16 %v301, %v300
    %v314 = vpack.c.b16 %v303, %v302
    %v315 = vpack.c.b16 %v305, %v304
    %v316 = vpack.c.b16 %v307, %v306
    %v317 = vpack.c.b16 %v309, %v308
    %326 = vmatpush.bf16.msra.mxu0 %v317
    %327 = vmatpush.bf16.msra.mxu0 %v316
    %328 = vmatpush.bf16.msra.mxu0 %v315
    %329 = vmatpush.bf16.msra.mxu0 %v314
    %330 = vmatpush.bf16.msra.mxu0 %v313
    %331 = vmatpush.bf16.msra.mxu0 %v312
    %332 = vmatpush.bf16.msra.mxu0 %v311
    %333 = vmatpush.bf16.msra.mxu0 %v310
    %334 = vmatmul.bf16.gmra.mxu0 %v257
    %v335 = vpop.f32.mrf.mxu0
    %v336 = vadd.f32 %v276, %v335
    %v337 = vpop.f32.mrf.mxu0
    %338 = vdwg.mxu0
    %v339 = vmax.f32 %v336, 0.0
    %v340 = vpack.c.bf16 %v339, %v339
    %v341 = vld [vmem:[#allocation4 + $0x10] sm:$0xf]
    %v342 = vld [vmem:[#allocation4 + $0x38] sm:$0xf]
    %v343 = vld [vmem:[#allocation4 + $0x60] sm:$0xf]
    %v344 = vld [vmem:[#allocation4 + $0x88] sm:$0xf]
    %v345 = vld [vmem:[#allocation4 + $0xb0] sm:$0xf]
    %v346 = vld [vmem:[#allocation4 + $0xd8] sm:$0xf]
    %v347 = vld [vmem:[#allocation4 + $0x100] sm:$0xf]
    %v348 = vld [vmem:[#allocation4 + $0x128] sm:$0xf]
    %v349 = vld [vmem:[#allocation4 + $0x150] sm:$0xf]
    %v350 = vld [vmem:[#allocation4 + $0x178] sm:$0xf]
    %v351 = vld [vmem:[#allocation4 + $0x1a0] sm:$0xf]
    %v352 = vld [vmem:[#allocation4 + $0x1c8] sm:$0xf]
    %v353 = vld [vmem:[#allocation4 + $0x1f0] sm:$0xf]
    %v354 = vld [vmem:[#allocation4 + $0x218] sm:$0xf]
    %v355 = vld [vmem:[#allocation4 + $0x240] sm:$0xf]
    %v356 = vld [vmem:[#allocation4 + $0x268] sm:$0xf]
    %v357 = vld [vmem:[%s5 + $0x4] sm:$0x1]
    %v359 = vperm.slane %v357, 0
    %v377 = vunpack.c.l.b16 %v341
    %v378 = vunpack.c.l.b16 %v342
    %v379 = vunpack.c.l.b16 %v343
    %v380 = vunpack.c.l.b16 %v344
    %v381 = vunpack.c.l.b16 %v345
    %v382 = vunpack.c.l.b16 %v346
    %v383 = vunpack.c.l.b16 %v347
    %v384 = vunpack.c.l.b16 %v348
    %v385 = vunpack.c.l.b16 %v349
    %v386 = vunpack.c.l.b16 %v350
    %v387 = vunpack.c.l.b16 %v351
    %v388 = vunpack.c.l.b16 %v352
    %v389 = vunpack.c.l.b16 %v353
    %v390 = vunpack.c.l.b16 %v354
    %v391 = vunpack.c.l.b16 %v355
    %v392 = vunpack.c.l.b16 %v356
    %v393 = vpack.c.b16 %v378, %v377
    %v394 = vpack.c.b16 %v380, %v379
    %v395 = vpack.c.b16 %v382, %v381
    %v396 = vpack.c.b16 %v384, %v383
    %v397 = vpack.c.b16 %v386, %v385
    %v398 = vpack.c.b16 %v388, %v387
    %v399 = vpack.c.b16 %v390, %v389
    %v400 = vpack.c.b16 %v392, %v391
    %409 = vmatpush.bf16.msra.mxu0 %v400
    %410 = vmatpush.bf16.msra.mxu0 %v399
    %411 = vmatpush.bf16.msra.mxu0 %v398
    %412 = vmatpush.bf16.msra.mxu0 %v397
    %413 = vmatpush.bf16.msra.mxu0 %v396
    %414 = vmatpush.bf16.msra.mxu0 %v395
    %415 = vmatpush.bf16.msra.mxu0 %v394
    %416 = vmatpush.bf16.msra.mxu0 %v393
    %417 = vmatmul.bf16.gmra.mxu0 %v340
    %v418 = vpop.f32.mrf.mxu0
    %v419 = vadd.f32 %v359, %v418
    %v420 = vpop.f32.mrf.mxu0
    %421 = vdwg.mxu0
    %s422 = sld [smem:[#allocation3]]
    %p423 = scmp.ne.s32.totalorder %s422, 0
    %v424 = vld [vmem:[%s2] sm:$0xff]
    %s425 = scalar_select %p423, 1, 0
    %v426 = vstv %s425
    %vm427 = vcmp.eq.s32.totalorder %v426, 1
    %v428 = vsel %vm427, %v419, %v424
    %v429 = vpack.c.bf16 %v428, %v428
    %v430 = vld [vmem:[#allocation4 + $0x14] sm:$0xf]
    %v431 = vld [vmem:[#allocation4 + $0x3c] sm:$0xf]
    %v432 = vld [vmem:[#allocation4 + $0x64] sm:$0xf]
    %v433 = vld [vmem:[#allocation4 + $0x8c] sm:$0xf]
    %v434 = vld [vmem:[#allocation4 + $0xb4] sm:$0xf]
    %v435 = vld [vmem:[#allocation4 + $0xdc] sm:$0xf]
    %v436 = vld [vmem:[#allocation4 + $0x104] sm:$0xf]
    %v437 = vld [vmem:[#allocation4 + $0x12c] sm:$0xf]
    %v438 = vld [vmem:[#allocation4 + $0x154] sm:$0xf]
    %v439 = vld [vmem:[#allocation4 + $0x17c] sm:$0xf]
    %v440 = vld [vmem:[#allocation4 + $0x1a4] sm:$0xf]
    %v441 = vld [vmem:[#allocation4 + $0x1cc] sm:$0xf]
    %v442 = vld [vmem:[#allocation4 + $0x1f4] sm:$0xf]
    %v443 = vld [vmem:[#allocation4 + $0x21c] sm:$0xf]
    %v444 = vld [vmem:[#allocation4 + $0x244] sm:$0xf]
    %v445 = vld [vmem:[#allocation4 + $0x26c] sm:$0xf]
    %v446 = vld [vmem:[%s5 + $0x5] sm:$0x1]
    %v448 = vperm.slane %v446, 0
    %v466 = vunpack.c.l.b16 %v430
    %v467 = vunpack.c.l.b16 %v431
    %v468 = vunpack.c.l.b16 %v432
    %v469 = vunpack.c.l.b16 %v433
    %v470 = vunpack.c.l.b16 %v434
    %v471 = vunpack.c.l.b16 %v435
    %v472 = vunpack.c.l.b16 %v436
    %v473 = vunpack.c.l.b16 %v437
    %v474 = vunpack.c.l.b16 %v438
    %v475 = vunpack.c.l.b16 %v439
    %v476 = vunpack.c.l.b16 %v440
    %v477 = vunpack.c.l.b16 %v441
    %v478 = vunpack.c.l.b16 %v442
    %v479 = vunpack.c.l.b16 %v443
    %v480 = vunpack.c.l.b16 %v444
    %v481 = vunpack.c.l.b16 %v445
    %v482 = vpack.c.b16 %v467, %v466
    %v483 = vpack.c.b16 %v469, %v468
    %v484 = vpack.c.b16 %v471, %v470
    %v485 = vpack.c.b16 %v473, %v472
    %v486 = vpack.c.b16 %v475, %v474
    %v487 = vpack.c.b16 %v477, %v476
    %v488 = vpack.c.b16 %v479, %v478
    %v489 = vpack.c.b16 %v481, %v480
    %498 = vmatpush.bf16.msra.mxu0 %v489
    %499 = vmatpush.bf16.msra.mxu0 %v488
    %500 = vmatpush.bf16.msra.mxu0 %v487
    %501 = vmatpush.bf16.msra.mxu0 %v486
    %502 = vmatpush.bf16.msra.mxu0 %v485
    %503 = vmatpush.bf16.msra.mxu0 %v484
    %504 = vmatpush.bf16.msra.mxu0 %v483
    %505 = vmatpush.bf16.msra.mxu0 %v482
    %506 = vmatmul.bf16.gmra.mxu0 %v429
    %v507 = vpop.f32.mrf.mxu0
    %v508 = vadd.f32 %v448, %v507
    %v509 = vpop.f32.mrf.mxu0
    %510 = vdwg.mxu0
    %v511 = vmax.f32 %v508, 0.0
    %v512 = vpack.c.bf16 %v511, %v511
    %v513 = vld [vmem:[#allocation4 + $0x18] sm:$0xff]
    %v514 = vld [vmem:[#allocation4 + $0x40] sm:$0xff]
    %v515 = vld [vmem:[#allocation4 + $0x68] sm:$0xff]
    %v516 = vld [vmem:[#allocation4 + $0x90] sm:$0xff]
    %v517 = vld [vmem:[#allocation4 + $0xb8] sm:$0xff]
    %v518 = vld [vmem:[#allocation4 + $0xe0] sm:$0xff]
    %v519 = vld [vmem:[#allocation4 + $0x108] sm:$0xff]
    %v520 = vld [vmem:[#allocation4 + $0x130] sm:$0xff]
    %v521 = vld [vmem:[#allocation4 + $0x158] sm:$0xff]
    %v522 = vld [vmem:[#allocation4 + $0x180] sm:$0xff]
    %v523 = vld [vmem:[#allocation4 + $0x1a8] sm:$0xff]
    %v524 = vld [vmem:[#allocation4 + $0x1d0] sm:$0xff]
    %v525 = vld [vmem:[#allocation4 + $0x1f8] sm:$0xff]
    %v526 = vld [vmem:[#allocation4 + $0x220] sm:$0xff]
    %v527 = vld [vmem:[#allocation4 + $0x248] sm:$0xff]
    %v528 = vld [vmem:[#allocation4 + $0x270] sm:$0xff]
    %v529 = vld [vmem:[%s5 + $0x6] sm:$0x3]
    %v531 = vperm.slane %v529, 0
    %v532 = vperm.slane %v529, 1
    %v551 = vunpack.c.l.b16 %v513
    %v552 = vunpack.c.h.b16 %v513
    %v553 = vunpack.c.l.b16 %v514
    %v554 = vunpack.c.h.b16 %v514
    %v555 = vunpack.c.l.b16 %v515
    %v556 = vunpack.c.h.b16 %v515
    %v557 = vunpack.c.l.b16 %v516
    %v558 = vunpack.c.h.b16 %v516
    %v559 = vunpack.c.l.b16 %v517
    %v560 = vunpack.c.h.b16 %v517
    %v561 = vunpack.c.l.b16 %v518
    %v562 = vunpack.c.h.b16 %v518
    %v563 = vunpack.c.l.b16 %v519
    %v564 = vunpack.c.h.b16 %v519
    %v565 = vunpack.c.l.b16 %v520
    %v566 = vunpack.c.h.b16 %v520
    %v567 = vunpack.c.l.b16 %v521
    %v568 = vunpack.c.h.b16 %v521
    %v569 = vunpack.c.l.b16 %v522
    %v570 = vunpack.c.h.b16 %v522
    %v571 = vunpack.c.l.b16 %v523
    %v572 = vunpack.c.h.b16 %v523
    %v573 = vunpack.c.l.b16 %v524
    %v574 = vunpack.c.h.b16 %v524
    %v575 = vunpack.c.l.b16 %v525
    %v576 = vunpack.c.h.b16 %v525
    %v577 = vunpack.c.l.b16 %v526
    %v578 = vunpack.c.h.b16 %v526
    %v579 = vunpack.c.l.b16 %v527
    %v580 = vunpack.c.h.b16 %v527
    %v581 = vunpack.c.l.b16 %v528
    %v582 = vunpack.c.h.b16 %v528
    %v583 = vpack.c.b16 %v553, %v551
    %v584 = vpack.c.b16 %v554, %v552
    %v585 = vpack.c.b16 %v557, %v555
    %v586 = vpack.c.b16 %v558, %v556
    %v587 = vpack.c.b16 %v561, %v559
    %v588 = vpack.c.b16 %v562, %v560
    %v589 = vpack.c.b16 %v565, %v563
    %v590 = vpack.c.b16 %v566, %v564
    %v591 = vpack.c.b16 %v569, %v567
    %v592 = vpack.c.b16 %v570, %v568
    %v593 = vpack.c.b16 %v573, %v571
    %v594 = vpack.c.b16 %v574, %v572
    %v595 = vpack.c.b16 %v577, %v575
    %v596 = vpack.c.b16 %v578, %v576
    %v597 = vpack.c.b16 %v581, %v579
    %v598 = vpack.c.b16 %v582, %v580
    %615 = vmatpush.bf16.msra.mxu0 %v597
    %616 = vmatpush.bf16.msra.mxu0 %v595
    %617 = vmatpush.bf16.msra.mxu0 %v593
    %618 = vmatpush.bf16.msra.mxu0 %v591
    %619 = vmatpush.bf16.msra.mxu0 %v589
    %620 = vmatpush.bf16.msra.mxu0 %v587
    %621 = vmatpush.bf16.msra.mxu0 %v585
    %622 = vmatpush.bf16.msra.mxu0 %v583
    %623 = vmatmul.bf16.gmra.mxu0 %v512
    %v624 = vpop.f32.mrf.mxu0
    %v625 = vadd.f32 %v531, %v624
    %v626 = vpop.f32.mrf.mxu0
    %627 = vdwg.mxu0
    %628 = vmatpush.bf16.msra.mxu0 %v598
    %629 = vmatpush.bf16.msra.mxu0 %v596
    %630 = vmatpush.bf16.msra.mxu0 %v594
    %631 = vmatpush.bf16.msra.mxu0 %v592
    %632 = vmatpush.bf16.msra.mxu0 %v590
    %633 = vmatpush.bf16.msra.mxu0 %v588
    %634 = vmatpush.bf16.msra.mxu0 %v586
    %635 = vmatpush.bf16.msra.mxu0 %v584
    %636 = vmatmul.bf16.gmra.mxu0 %v512
    %v637 = vpop.f32.mrf.mxu0
    %v638 = vadd.f32 %v532, %v637
    %v639 = vpop.f32.mrf.mxu0
    %640 = vdwg.mxu0
    %v641 = vmul.f32 %v638, 0.5
    %v642 = vmul.f32 %v641, 1.442695
    %v643 = vpow.pop %v642
    %v644 = vmul.f32 %v643, %v38
    %v645 = vadd.f32 %v625, %v644
    %v646 = vpack.c.bf16 %v645, %v645
    %v647 = vld [vmem:[#allocation4 + $0x20] sm:$0xf]
    %v648 = vld [vmem:[#allocation4 + $0x48] sm:$0xf]
    %v649 = vld [vmem:[#allocation4 + $0x70] sm:$0xf]
    %v650 = vld [vmem:[#allocation4 + $0x98] sm:$0xf]
    %v651 = vld [vmem:[#allocation4 + $0xc0] sm:$0xf]
    %v652 = vld [vmem:[#allocation4 + $0xe8] sm:$0xf]
    %v653 = vld [vmem:[#allocation4 + $0x110] sm:$0xf]
    %v654 = vld [vmem:[#allocation4 + $0x138] sm:$0xf]
    %v655 = vld [vmem:[#allocation4 + $0x160] sm:$0xf]
    %v656 = vld [vmem:[#allocation4 + $0x188] sm:$0xf]
    %v657 = vld [vmem:[#allocation4 + $0x1b0] sm:$0xf]
    %v658 = vld [vmem:[#allocation4 + $0x1d8] sm:$0xf]
    %v659 = vld [vmem:[#allocation4 + $0x200] sm:$0xf]
    %v660 = vld [vmem:[#allocation4 + $0x228] sm:$0xf]
    %v661 = vld [vmem:[#allocation4 + $0x250] sm:$0xf]
    %v662 = vld [vmem:[#allocation4 + $0x278] sm:$0xf]
    %v663 = vld [vmem:[%s5 + $0x8] sm:$0x1]
    %v665 = vperm.slane %v663, 0
    %v683 = vunpack.c.l.b16 %v647
    %v684 = vunpack.c.l.b16 %v648
    %v685 = vunpack.c.l.b16 %v649
    %v686 = vunpack.c.l.b16 %v650
    %v687 = vunpack.c.l.b16 %v651
    %v688 = vunpack.c.l.b16 %v652
    %v689 = vunpack.c.l.b16 %v653
    %v690 = vunpack.c.l.b16 %v654
    %v691 = vunpack.c.l.b16 %v655
    %v692 = vunpack.c.l.b16 %v656
    %v693 = vunpack.c.l.b16 %v657
    %v694 = vunpack.c.l.b16 %v658
    %v695 = vunpack.c.l.b16 %v659
    %v696 = vunpack.c.l.b16 %v660
    %v697 = vunpack.c.l.b16 %v661
    %v698 = vunpack.c.l.b16 %v662
    %v699 = vpack.c.b16 %v684, %v683
    %v700 = vpack.c.b16 %v686, %v685
    %v701 = vpack.c.b16 %v688, %v687
    %v702 = vpack.c.b16 %v690, %v689
    %v703 = vpack.c.b16 %v692, %v691
    %v704 = vpack.c.b16 %v694, %v693
    %v705 = vpack.c.b16 %v696, %v695
    %v706 = vpack.c.b16 %v698, %v697
    %715 = vmatpush.bf16.msra.mxu0 %v706
    %716 = vmatpush.bf16.msra.mxu0 %v705
    %717 = vmatpush.bf16.msra.mxu0 %v704
    %718 = vmatpush.bf16.msra.mxu0 %v703
    %719 = vmatpush.bf16.msra.mxu0 %v702
    %720 = vmatpush.bf16.msra.mxu0 %v701
    %721 = vmatpush.bf16.msra.mxu0 %v700
    %722 = vmatpush.bf16.msra.mxu0 %v699
    %723 = vmatmul.bf16.gmra.mxu0 %v646
    %v724 = vpop.f32.mrf.mxu0
    %v725 = vadd.f32 %v665, %v724
    %v726 = vpop.f32.mrf.mxu0
    %727 = vdwg.mxu0
    %v728 = vmax.f32 %v725, 0.0
    %v729 = vpack.c.bf16 %v728, %v728
    %v730 = vld [vmem:[#allocation4 + $0x24] sm:$0xf]
    %v731 = vld [vmem:[#allocation4 + $0x4c] sm:$0xf]
    %v732 = vld [vmem:[#allocation4 + $0x74] sm:$0xf]
    %v733 = vld [vmem:[#allocation4 + $0x9c] sm:$0xf]
    %v734 = vld [vmem:[#allocation4 + $0xc4] sm:$0xf]
    %v735 = vld [vmem:[#allocation4 + $0xec] sm:$0xf]
    %v736 = vld [vmem:[#allocation4 + $0x114] sm:$0xf]
    %v737 = vld [vmem:[#allocation4 + $0x13c] sm:$0xf]
    %v738 = vld [vmem:[#allocation4 + $0x164] sm:$0xf]
    %v739 = vld [vmem:[#allocation4 + $0x18c] sm:$0xf]
    %v740 = vld [vmem:[#allocation4 + $0x1b4] sm:$0xf]
    %v741 = vld [vmem:[#allocation4 + $0x1dc] sm:$0xf]
    %v742 = vld [vmem:[#allocation4 + $0x204] sm:$0xf]
    %v743 = vld [vmem:[#allocation4 + $0x22c] sm:$0xf]
    %v744 = vld [vmem:[#allocation4 + $0x254] sm:$0xf]
    %v745 = vld [vmem:[#allocation4 + $0x27c] sm:$0xf]
    %v746 = vld [vmem:[%s5 + $0x9] sm:$0x1]
    %v748 = vperm.slane %v746, 0
    %v766 = vunpack.c.l.b16 %v730
    %v767 = vunpack.c.l.b16 %v731
    %v768 = vunpack.c.l.b16 %v732
    %v769 = vunpack.c.l.b16 %v733
    %v770 = vunpack.c.l.b16 %v734
    %v771 = vunpack.c.l.b16 %v735
    %v772 = vunpack.c.l.b16 %v736
    %v773 = vunpack.c.l.b16 %v737
    %v774 = vunpack.c.l.b16 %v738
    %v775 = vunpack.c.l.b16 %v739
    %v776 = vunpack.c.l.b16 %v740
    %v777 = vunpack.c.l.b16 %v741
    %v778 = vunpack.c.l.b16 %v742
    %v779 = vunpack.c.l.b16 %v743
    %v780 = vunpack.c.l.b16 %v744
    %v781 = vunpack.c.l.b16 %v745
    %v782 = vpack.c.b16 %v767, %v766
    %v783 = vpack.c.b16 %v769, %v768
    %v784 = vpack.c.b16 %v771, %v770
    %v785 = vpack.c.b16 %v773, %v772
    %v786 = vpack.c.b16 %v775, %v774
    %v787 = vpack.c.b16 %v777, %v776
    %v788 = vpack.c.b16 %v779, %v778
    %v789 = vpack.c.b16 %v781, %v780
    %798 = vmatpush.bf16.msra.mxu0 %v789
    %799 = vmatpush.bf16.msra.mxu0 %v788
    %800 = vmatpush.bf16.msra.mxu0 %v787
    %801 = vmatpush.bf16.msra.mxu0 %v786
    %802 = vmatpush.bf16.msra.mxu0 %v785
    %803 = vmatpush.bf16.msra.mxu0 %v784
    %804 = vmatpush.bf16.msra.mxu0 %v783
    %805 = vmatpush.bf16.msra.mxu0 %v782
    %806 = vmatmul.bf16.gmra.mxu0 %v729
    %v807 = vpop.f32.mrf.mxu0
    %v808 = vadd.f32 %v748, %v807
    %v809 = vpop.f32.mrf.mxu0
    %810 = vdwg.mxu0
    %811 = vst [vmem:[%s6] sm:$0xff] %v256
    %812 = vst [vmem:[%s6 + $0x8] sm:$0xff] %v419
    %813 = vst [vmem:[%s6 + $0x10] sm:$0xff] %v808
    // Predicated region
    $region26: #{forward.1} parent=1 // pred_check
      _
    $region27: #{forward.1} parent=1 // pred_check_branch
      %815 = sbr.rel (0) target = $region29
    $region28: #{forward.1} parent=1 // pred_region
      _
    $region29: #{forward.1} parent=1 // pred_fallthru
      _
    // Predicated region
    $region30: #{forward.1} parent=1 // pred_check
      _
    $region31: #{forward.1} parent=1 // pred_check_branch
      %817 = sbr.rel (0) target = $region33
    $region32: #{forward.1} parent=1 // pred_region
      _
    $region33: #{forward.1} parent=1 // pred_fallthru
      _
    %818 = vsyncpa [#allocation5], 1

</llo_original>
